<compile_context>
chip_gen: v7x
topology: tpu7x:2x2x1
jax: 0.10.0
libtpu: 0.0.40
codegen_flags: <defaults>
</compile_context>

<pallas_src>
import functools

import jax
import jax.numpy as jnp
from jax.experimental import pallas as pl
from jax.experimental.pallas import tpu as pltpu


# ---------------------------------------------------------------------------
# Kernel
# ---------------------------------------------------------------------------
def _act_quant_kernel(x_ref, o_ref, *, a_bit: int, af_bit: int, compute_dtype):
    """Elementwise folded DoReFa activation quantization.

    The original chain
        a = clip(x, -2^ai, 2^ai - 2^-af) / 2^ai
        q = floor(a * 2^a_bit) / 2^a_bit
        out = q * 2^ai
    algebraically reduces (ai = a_bit - af) to
        out = floor(clip(x, clip_min, clip_max) * 2^af) * 2^-af
    All scalings are exact powers of two, so this is bit-identical to the
    original formulation while using ~half the VALU ops.

    compute_dtype is bf16 only when the input is bf16 and a_bit <= 8 (all
    quantization levels exactly representable) on chips with bf16 VALU.
    """
    ai_bit = a_bit - af_bit
    scale = 2.0 ** af_bit
    inv_scale = 2.0 ** (-af_bit)
    clip_min = -(2.0 ** ai_bit)
    clip_max = 2.0 ** ai_bit - inv_scale

    x = x_ref[...].astype(compute_dtype)
    q = jnp.floor(jnp.clip(x, clip_min, clip_max) * scale) * inv_scale
    o_ref[...] = q.astype(o_ref.dtype)


# ---------------------------------------------------------------------------
# Wrapper
# ---------------------------------------------------------------------------
_LANE_CANDIDATES = (512, 256, 128)   # prefer wide lane-dense slabs, fall back to 128
_TARGET_GRID_STEPS = 8               # aim for >=~8 steps so the pipeline overlaps


def _round_up(n: int, m: int) -> int:
    return ((n + m - 1) // m) * m


def _tpu_generation() -> int:
    """Best-effort TPU generation (4/5/6/7); 0 if unknown."""
    try:
        kind = jax.devices()[0].device_kind.lower()
    except Exception:
        return 0
    for gen in (7, 6, 5, 4):
        if f"v{gen}" in kind or f"{gen}x" in kind:
            return gen
    return 0


def activation_quantize(x: jax.Array, a_bit: int, af_bit: int) -> jax.Array:
    """Quantize activations like activation_quantize_fn.forward.

    Args:
      x:      float activations (any shape; op is elementwise). f32 or bf16.
      a_bit:  total activation bit precision (<=16 or 32).
      af_bit: fractional bits (the math also tolerates af_bit > a_bit, i.e.
              negative integer bits, same as the PyTorch module).

    Returns:
      Quantized activations, same shape/dtype as x.
    """
    assert a_bit <= 16 or a_bit == 32, "a_bit must be <= 16 or exactly 32"
    if a_bit == 32:
        return x  # identity path, matches PyTorch module

    orig_shape = x.shape
    orig_dtype = x.dtype
    total = 1
    for d in orig_shape:
        total *= d
    if total == 0:
        return x

    gen = _tpu_generation()
    itemsize = x.dtype.itemsize

    # Per-generation max block rows: keep in+out double-buffered footprint well
    # inside the scoped-VMEM defaults (v5e 16 MiB, v6e/v7x 32 MiB scoped).
    if gen >= 7:
        max_rows = 4096      # 8 MiB f32 block  -> ~32 MiB footprint (limit raised below)
    elif gen == 6:
        max_rows = 2048      # 4 MiB f32 block  -> ~16 MiB footprint
    else:
        max_rows = 1024      # v5e / unknown: 2 MiB block -> ~8 MiB footprint

    # Native sublane tile for the dtype: 8 rows for 4-byte, 16 for 2-byte.
    sublane_align = max(8, 32 // itemsize)

    # Lane width: largest of (512, 256, 128) dividing total -> no padding in the
    # common case; otherwise 128 with a <128-element pad.
    lane = 128
    for cand in _LANE_CANDIDATES:
        if total % cand == 0:
            lane = cand
            break

    rows = pl.cdiv(total, lane)
    padded_total = rows * lane

    x_flat = x.reshape(-1)
    if padded_total != total:
        # Rare path: pad fewer than `lane` elements (extra copy gated hard).
        x_flat = jnp.pad(x_flat, (0, padded_total - total))
    x2d = x_flat.reshape(rows, lane)

    # Tile rows: ~_TARGET_GRID_STEPS grid steps for mid-size inputs, capped at
    # the per-generation block budget.  Pallas masks the partial last block, so
    # rows need not be a multiple of tile_rows.
    tile_rows = min(max_rows,
                    _round_up(pl.cdiv(rows, _TARGET_GRID_STEPS), sublane_align))
    if tile_rows >= rows:
        tile_rows = rows     # block == full array dim (always a legal block shape)
    grid = (pl.cdiv(rows, tile_rows),)

    # bf16-native compute is bit-exact vs f32 for a_bit <= 8; keep f32 on v5e
    # (no bf16 VALU) and for larger a_bit.
    if orig_dtype == jnp.bfloat16 and a_bit <= 8 and gen >= 6:
        compute_dtype = jnp.bfloat16
    else:
        compute_dtype = jnp.float32

    kernel = functools.partial(
        _act_quant_kernel, a_bit=a_bit, af_bit=af_bit, compute_dtype=compute_dtype)

    # Raise the scoped-VMEM limit only when the v7x-sized blocks need it.
    block_bytes = tile_rows * lane * itemsize
    vmem_needed = 4 * block_bytes + (2 << 20)   # in+out, double-buffered, + slack
    compiler_kwargs = {}
    if vmem_needed > (24 << 20):
        compiler_kwargs["vmem_limit_bytes"] = min(int(vmem_needed + (8 << 20)),
                                                  48 << 20)

    out2d = pl.pallas_call(
        kernel,
        out_shape=jax.ShapeDtypeStruct((rows, lane), orig_dtype),
        grid=grid,
        in_specs=[pl.BlockSpec((tile_rows, lane), lambda i: (i, 0))],
        out_specs=pl.BlockSpec((tile_rows, lane), lambda i: (i, 0)),
        compiler_params=pltpu.CompilerParams(
            # Elementwise, no cross-block dependence -> shard across both TCs
            # on v7x; neutral on v5e/v6e.
            dimension_semantics=("parallel",),
            **compiler_kwargs,
        ),
        cost_estimate=pl.CostEstimate(
            flops=5 * padded_total,
            transcendentals=0,
            bytes_accessed=2 * padded_total * itemsize,
        ),
    )(x2d)

    if padded_total != total:
        return out2d.reshape(-1)[:total].reshape(orig_shape)
    return out2d.reshape(orig_shape)


# TODO(synk): for best end-to-end perf, fuse this quantization into the
# epilogue of the producing matmul/conv kernel to avoid the HBM round trip.


# ---------------------------------------------------------------------------
# Pure-JAX reference mirroring the PyTorch forward (unfolded form).
# ---------------------------------------------------------------------------
def _reference(x, a_bit, af_bit):
    if a_bit == 32:
        return x
    ai_bit = a_bit - af_bit
    a = jnp.clip(x, -2.0 ** ai_bit, 2.0 ** ai_bit - 1.0 / 2.0 ** af_bit)
    a = a / 2.0 ** ai_bit
    n = float(2 ** a_bit)
    q = jnp.floor(a * n) / n
    return q * 2.0 ** ai_bit


if __name__ == "__main__":
    # Module config: 8-bit activations, 4 fractional bits.
    a_bit, af_bit = 8, 4

    key = jax.random.PRNGKey(0)
    # NCHW input, small shape; scaled so some values hit the clip range.
    x = jax.random.normal(key, (2, 4, 16, 16), dtype=jnp.float32) * 4.0

    out = jax.block_until_ready(activation_quantize(x, a_bit, af_bit))
    ref = _reference(x, a_bit, af_bit)
    assert out.shape == x.shape and out.dtype == x.dtype
    assert jnp.max(jnp.abs(out - ref)) < 1e-6, "mismatch vs reference"

    # Non-128-divisible size: exercises the rare pad path + partial last block.
    x_odd = jax.random.normal(jax.random.PRNGKey(1), (3, 5, 17, 13),
                              dtype=jnp.float32) * 4.0
    out_odd = jax.block_until_ready(activation_quantize(x_odd, a_bit, af_bit))
    assert jnp.max(jnp.abs(out_odd - _reference(x_odd, a_bit, af_bit))) < 1e-6

    # bf16 path (bit-exact for a_bit <= 8 whether compute runs in bf16 or f32).
    x_bf16 = x.astype(jnp.bfloat16)
    out_bf16 = jax.block_until_ready(activation_quantize(x_bf16, a_bit, af_bit))
    ref_bf16 = _reference(x_bf16.astype(jnp.float32), a_bit, af_bit).astype(jnp.bfloat16)
    assert out_bf16.dtype == jnp.bfloat16
    assert jnp.max(jnp.abs(out_bf16.astype(jnp.float32) -
                           ref_bf16.astype(jnp.float32))) < 1e-2

    # 32-bit identity path (no kernel needed).
    out32 = jax.block_until_ready(activation_quantize(x, 32, 0))
    assert jnp.array_equal(out32, x)

    print("KERNEL_OK")
</pallas_src>

<mosaic_0001>
module attributes {stable_mosaic.version = 11 : i64} {
  func.func @_act_quant_kernel(%arg0: i32, %arg1: memref<4x512xf32, #tpu.memory_space<vmem>>, %arg2: memref<4x512xf32, #tpu.memory_space<vmem>>) attributes {dimension_semantics = [#tpu.dimension_semantics<parallel>], iteration_bounds = array<i64: 1>, scalar_prefetch = 0 : i64, scratch_operands = 0 : i64, tpu.core_type = #tpu.core_type<tc>, window_params = [{transform_indices = @transform_0, window_bounds = array<i64: 4, 512>}, {transform_indices = @transform_1, window_bounds = array<i64: 4, 512>}]} {
    %c0 = arith.constant 0 : index
    %c0_0 = arith.constant 0 : index
    %0 = vector.load %arg1[%c0, %c0_0] : memref<4x512xf32, #tpu.memory_space<vmem>>, vector<4x512xf32>
    %cst = arith.constant -1.600000e+01 : f32
    %cst_1 = arith.constant 1.593750e+01 : f32
    %1 = vector.broadcast %cst : f32 to vector<4x512xf32>
    %2 = arith.maximumf %1, %0 : vector<4x512xf32>
    %3 = vector.broadcast %cst_1 : f32 to vector<4x512xf32>
    %4 = arith.minimumf %3, %2 : vector<4x512xf32>
    %cst_2 = arith.constant 1.600000e+01 : f32
    %5 = vector.broadcast %cst_2 : f32 to vector<4x512xf32>
    %6 = arith.mulf %4, %5 : vector<4x512xf32>
    %7 = math.floor %6 : vector<4x512xf32>
    %cst_3 = arith.constant 6.250000e-02 : f32
    %8 = vector.broadcast %cst_3 : f32 to vector<4x512xf32>
    %9 = arith.mulf %7, %8 : vector<4x512xf32>
    %c0_4 = arith.constant 0 : index
    %c0_5 = arith.constant 0 : index
    %10 = vector.load %arg2[%c0_4, %c0_5] : memref<4x512xf32, #tpu.memory_space<vmem>>, vector<4x512xf32>
    tpu.vector_store %arg2[%c0_4, %c0_5], %9 {strides = array<i32>} : memref<4x512xf32, #tpu.memory_space<vmem>>, vector<4x512xf32>,
    return
  }
  func.func @transform_0(%arg0: i32) -> (i32, i32) {
    %c0_i32 = arith.constant 0 : i32
    %c0_i32_0 = arith.constant 0 : i32
    return %arg0, %c0_i32 : i32, i32
  }
  func.func @transform_1(%arg0: i32) -> (i32, i32) {
    %c0_i32 = arith.constant 0 : i32
    %c0_i32_0 = arith.constant 0 : i32
    return %arg0, %c0_i32 : i32, i32
  }
}

</mosaic_0001>

<llo_original>
// kernel: tpu_custom_call.1
$region0: #{tpu_custom_call.1}
  #allocation0 [shape = 'u32[]', space=smem, size = 0x4, offset = 0x4, fixed_abs, tag = 'smem constant byte address 0x4 - core index']
  #allocation1 [shape = 'u32[144,128]{1,0:T(1,128)}', space=vmem, size = 0x12000, scoped, tag = 'internal scratch']
  %s0 = inlined_call_operand.hbm [shape: f32[4,512], index: 0, kind: input, shape index: {}]
  %s1 = inlined_call_operand.hbm [shape: f32[4,512], index: 1, kind: output, shape index: {}]
  %s2 = sld [smem:[#allocation0]]
  $region18: #{tpu_custom_call.1} parent=0
    _
  %s4 = ssub.s32 1, %s2
  %s5 = scalar_select 0, %s4, %s2
  $region1: #{tpu_custom_call.1} parent=0
    #allocation2 [shape = 'u8[8192]{0}', space=vmem, size = 0x2000, scoped, tag = 'input window, operand 0, single buffered']
    #allocation3 [shape = 's32[1]{0}', space=sflag, size = 0x4, scoped, tag = 'scoped memory for tpu_custom_call.1']
    #allocation4 [shape = 's32[1]{0}', space=sflag, size = 0x4, scoped, tag = 'scoped memory for tpu_custom_call.1']
    #allocation5 [shape = 'u8[8192]{0}', space=vmem, size = 0x2000, scoped, tag = 'output window, operand 0, single buffered']
    %6 = vsyncpa [#allocation3], 0
    %7 = vsyncpa [#allocation4], 0
    // Predicated region
    $region2: #{tpu_custom_call.1} parent=1 // pred_check
      _
    $region3: #{tpu_custom_call.1} parent=1 // pred_check_branch
      %9 = sbr.rel (0) target = $region5
    $region4: #{tpu_custom_call.1} parent=1 // pred_region
      %s11 = ssub.s32 256, 256
      %12 = vsyncadd [#allocation3], %s11
      %s14 = sshll.u32 [#allocation2], 4
      %s15 = int_to_ptr.vmem [resolvable:$true] %s14
      %17 = dma.hbm_to_vmem [thread:$0]  %s0, 256, %s15, [#allocation3]
    $region5: #{tpu_custom_call.1} parent=1 // pred_fallthru
      _
    // Predicated region
    $region6: #{tpu_custom_call.1} parent=1 // pred_check
      _
    $region7: #{tpu_custom_call.1} parent=1 // pred_check_branch
      %19 = sbr.rel (0) target = $region9
    $region8: #{tpu_custom_call.1} parent=1 // pred_region
      %20 = dma.done [#allocation3], 256
    $region9: #{tpu_custom_call.1} parent=1 // pred_fallthru
      _
    %v21 = vld [vmem:[#allocation2] sm:$0xff]
    %v22 = vld [vmem:[#allocation2 + $0x8] sm:$0xff]
    %v23 = vmax.f32 %v21, -16.0
    %v24 = vmax.f32 %v22, -16.0
    %v25 = vmin.f32 %v23, 15.9375
    %v26 = vmin.f32 %v24, 15.9375
    %v27 = vmul.f32 %v25, 16.0
    %v28 = vmul.f32 %v26, 16.0
    %v29 = vfloor.f32 %v27
    %v30 = vfloor.f32 %v28
    %v31 = vmul.f32 %v29, 0.0625
    %v32 = vmul.f32 %v30, 0.0625
    %33 = vst [vmem:[#allocation5] sm:$0xff] %v31
    %34 = vst [vmem:[#allocation5 + $0x8] sm:$0xff] %v32
    // Predicated region
    $region10: #{tpu_custom_call.1} parent=1 // pred_check
      _
    $region11: #{tpu_custom_call.1} parent=1 // pred_check_branch
      %36 = sbr.rel (0) target = $region13
    $region12: #{tpu_custom_call.1} parent=1 // pred_region
      %s38 = ssub.s32 256, 256
      %39 = vsyncadd [#allocation4], %s38
      %s41 = sshll.u32 [#allocation5], 4
      %s42 = int_to_ptr.vmem [resolvable:$true] %s41
      %44 = dma.vmem_to_hbm [thread:$0]  %s42, 256, %s1, [#allocation4]
    $region13: #{tpu_custom_call.1} parent=1 // pred_fallthru
      _
    // Predicated region
    $region14: #{tpu_custom_call.1} parent=1 // pred_check
      _
    $region15: #{tpu_custom_call.1} parent=1 // pred_check_branch
      %46 = sbr.rel (0) target = $region17
    $region16: #{tpu_custom_call.1} parent=1 // pred_region
      %47 = dma.done [#allocation4], 256
    $region17: #{tpu_custom_call.1} parent=1 // pred_fallthru
      _
    %48 = vsyncpa [#allocation3], 1
    %49 = vsyncpa [#allocation4], 1

</llo_original>
